<compile_context>
chip_gen: v5e
topology: v5e:2x2
jax: 0.10.0
libtpu: 0.0.40
codegen_flags: <defaults>
</compile_context>

<pallas_src>
import functools

import jax
import jax.numpy as jnp
from jax import lax
from jax.experimental import pallas as pl
from jax.experimental.pallas import tpu as pltpu

BN_EPS = 1e-5
STATS_LANES = 128  # lane-padded per-image stat partials: [sum, sumsq, 0, ...]


def _vmem_limit_bytes():
    """Generation-aware VMEM budget (v7x: 64 MiB physical vs 128 MiB v5e/v6e)."""
    try:
        cap = int(pltpu.get_tpu_info().vmem_capacity_bytes)
    except Exception:
        cap = 64 * 1024 * 1024
    return max(32 * 1024 * 1024, min(cap // 2, 96 * 1024 * 1024))


@functools.partial(jax.jit, static_argnames=("stride", "padding"))
def conv_block(x, weight, bias, gamma, beta, *, stride=1, padding=0):
    """Conv2d + BatchNorm2d(train) + ReLU.  x: (N,Cin,H,W) f32 -> (N,Cout,OH,OW) f32."""
    del bias  # cancelled exactly by training-mode BN mean subtraction
    if stride != 1:
        # TODO(synk): stride > 1 needs strided per-tap rhs slices (or a strided
        # pre-slice of the padded input); bifpn's ConvBlock uses stride=1.
        raise NotImplementedError("conv_block Pallas kernel supports stride=1 only")

    n, cin, h, w = x.shape
    cout, _, kh, kw = weight.shape
    hp, wp = h + 2 * padding, w + 2 * padding
    oh, ow = hp - kh + 1, wp - kw + 1
    mwide = oh * wp            # per-image "wide" columns (KW-1 garbage per row)
    mimg = oh * ow             # per-image valid output pixels
    m = n * mimg               # BN population per channel

    # One cheap pre-pass over x: cast to bf16 FIRST, then pad + flatten spatial.
    xp = jnp.pad(x.astype(jnp.bfloat16),
                 ((0, 0), (0, 0), (padding, padding), (padding, padding)))
    xp_flat = xp.reshape(n, cin, hp * wp)
    if kw > 1:  # tail pad so the last tap's contiguous slice stays in bounds
        xp_flat = jnp.pad(xp_flat, ((0, 0), (0, 0), (0, kw - 1)))
    xl = xp_flat.shape[-1]

    # weight (Cout,Cin,KH,KW) -> per-tap (KH*KW, Cout, Cin) bf16 (f32 accumulate on MXU)
    w_taps = weight.transpose(2, 3, 0, 1).reshape(kh * kw, cout, cin).astype(jnp.bfloat16)

    vmem_limit = _vmem_limit_bytes()

    # ------------- pass 1: implicit-im2col conv + per-image BN stat partials -------------
    def conv_stats_kernel(w_ref, x_ref, y_ref, stats_ref):
        xflat = x_ref[0]                                        # (Cin, xl) bf16
        acc = jnp.zeros((cout, mwide), jnp.float32)
        for i in range(kh):                                     # implicit im2col:
            for j in range(kw):                                 # KH*KW shifted Cin-contractions
                d = i * wp + j
                acc = acc + jnp.dot(w_ref[i * kw + j], xflat[:, d:d + mwide],
                                    preferred_element_type=jnp.float32)
        # drop the KW-1 garbage columns per output row -> compact (Cout, OH*OW)
        yv = jnp.concatenate([acc[:, r * wp:r * wp + ow] for r in range(oh)], axis=1)
        y_ref[0] = yv.astype(y_ref.dtype)                       # bf16, lane-dense store
        # per-image BN partials from the f32 accumulator, lane-padded to 128
        s = jnp.sum(yv, axis=1, keepdims=True)
        ss = jnp.sum(yv * yv, axis=1, keepdims=True)
        stats_ref[0] = jnp.concatenate(
            [s, ss, jnp.zeros((cout, STATS_LANES - 2), jnp.float32)], axis=1)

    flops = 2 * n * kh * kw * cout * cin * mwide
    bytes_accessed = (n * cin * xl * 2 + w_taps.size * 2
                      + n * cout * mimg * 2 + n * cout * STATS_LANES * 4)

    y, stats = pl.pallas_call(
        conv_stats_kernel,
        out_shape=(
            jax.ShapeDtypeStruct((n, cout, mimg), jnp.bfloat16),
            jax.ShapeDtypeStruct((n, cout, STATS_LANES), jnp.float32),
        ),
        grid_spec=pltpu.PrefetchScalarGridSpec(
            num_scalar_prefetch=0,
            grid=(n,),
            in_specs=[
                pl.BlockSpec((kh * kw, cout, cin), lambda b: (0, 0, 0)),   # resident taps
                pl.BlockSpec((1, cin, xl), lambda b: (b, 0, 0)),           # streamed image
            ],
            out_specs=(
                pl.BlockSpec((1, cout, mimg), lambda b: (b, 0, 0)),
                pl.BlockSpec((1, cout, STATS_LANES), lambda b: (b, 0, 0)),
            ),
        ),
        compiler_params=pltpu.CompilerParams(
            dimension_semantics=("parallel",),
            vmem_limit_bytes=vmem_limit,
        ),
        cost_estimate=pl.CostEstimate(flops=int(flops), transcendentals=0,
                                      bytes_accessed=int(bytes_accessed)),
    )(w_taps, xp_flat)

    # Finalize BN stats (tiny (Cout,) math) and fold the affine into scale/shift.
    totals = stats.sum(axis=0)                          # (Cout, 128)
    mean = totals[:, 0] / m
    var = jnp.maximum(totals[:, 1] / m - mean * mean, 0.0)   # biased batch variance
    inv_std = lax.rsqrt(var + BN_EPS)
    scale = gamma * inv_std
    shift = beta - mean * scale
    ss_pair = jnp.stack([scale, shift], axis=-1)        # (Cout, 2) f32, resident side input

    # ---------------- pass 2: y*scale + shift, ReLU (channel-major, lane-dense) ----------------
    def bn_relu_kernel(ss_ref, y_ref, o_ref):
        sc = ss_ref[:, 0:1]
        sh = ss_ref[:, 1:2]
        o_ref[0] = jnp.maximum(y_ref[0].astype(jnp.float32) * sc + sh, 0.0)

    out = pl.pallas_call(
        bn_relu_kernel,
        out_shape=jax.ShapeDtypeStruct((n, cout, mimg), jnp.float32),
        grid_spec=pltpu.PrefetchScalarGridSpec(
            num_scalar_prefetch=0,
            grid=(n,),
            in_specs=[
                pl.BlockSpec((cout, 2), lambda b: (0, 0)),
                pl.BlockSpec((1, cout, mimg), lambda b: (b, 0, 0)),
            ],
            out_specs=pl.BlockSpec((1, cout, mimg), lambda b: (b, 0, 0)),
        ),
        compiler_params=pltpu.CompilerParams(
            dimension_semantics=("parallel",),
            vmem_limit_bytes=vmem_limit,
        ),
    )(ss_pair, y)

    # Already (N, Cout, OH*OW) channel-major: a layout-preserving (free) reshape
    # yields NCHW — no trailing transpose pass over HBM.
    return out.reshape(n, cout, oh, ow)


def _reference(x, weight, bias, gamma, beta, stride, padding):
    y = lax.conv_general_dilated(
        x, weight,
        window_strides=(stride, stride),
        padding=[(padding, padding), (padding, padding)],
        dimension_numbers=("NCHW", "OIHW", "NCHW"),
        precision=lax.Precision.HIGHEST,
    ) + bias.reshape(1, -1, 1, 1)
    mean = y.mean(axis=(0, 2, 3), keepdims=True)
    var = ((y - mean) ** 2).mean(axis=(0, 2, 3), keepdims=True)
    yn = (y - mean) / jnp.sqrt(var + BN_EPS)
    yn = yn * gamma.reshape(1, -1, 1, 1) + beta.reshape(1, -1, 1, 1)
    return jnp.maximum(yn, 0.0)


if __name__ == "__main__":
    # Small ConvBlock: in_channels=4, out_channels=8, kernel_size=3, stride=1, padding=1
    N, Cin, H, W = 2, 4, 16, 16
    Cout, KH, KW = 8, 3, 3
    stride, padding = 1, 1

    key = jax.random.PRNGKey(0)
    kx, kw_, kb, kg, kbeta = jax.random.split(key, 5)
    x = jax.random.normal(kx, (N, Cin, H, W), dtype=jnp.float32)
    weight = jax.random.normal(kw_, (Cout, Cin, KH, KW), dtype=jnp.float32) * 0.1
    bias = jax.random.normal(kb, (Cout,), dtype=jnp.float32) * 0.1
    gamma = jnp.ones((Cout,), dtype=jnp.float32) + 0.1 * jax.random.normal(
        kg, (Cout,), dtype=jnp.float32)
    beta = 0.1 * jax.random.normal(kbeta, (Cout,), dtype=jnp.float32)

    out = conv_block(x, weight, bias, gamma, beta, stride=stride, padding=padding)
    out = jax.block_until_ready(out)

    ref = _reference(x, weight, bias, gamma, beta, stride, padding)
    assert out.shape == ref.shape == (N, Cout, H, W)
    # bf16 MXU inputs + bf16 intermediate y (f32 accumulation / f32 stats) vs an
    # f32 HIGHEST-precision reference.
    err = float(jnp.max(jnp.abs(out - ref)))
    assert err < 7.5e-2, err

    print("KERNEL_OK")
</pallas_src>

<mosaic_0001>
module attributes {stable_mosaic.version = 11 : i64} {
  func.func @conv_stats_kernel(%arg0: i32, %arg1: memref<9x8x4xbf16, #tpu.memory_space<vmem>>, %arg2: memref<1x4x326xbf16, #tpu.memory_space<vmem>>, %arg3: memref<1x8x256xbf16, #tpu.memory_space<vmem>>, %arg4: memref<1x8x128xf32, #tpu.memory_space<vmem>>) attributes {dimension_semantics = [#tpu.dimension_semantics<parallel>], iteration_bounds = array<i64: 2>, scalar_prefetch = 0 : i64, scratch_operands = 0 : i64, tpu.core_type = #tpu.core_type<tc>, window_params = [{pipeline_mode = #tpu.pipeline_mode<synchronous>, transform_indices = @transform_0, window_bounds = array<i64: 9, 8, 4>}, {transform_indices = @transform_1, window_bounds = array<i64: 1, 4, 326>}, {transform_indices = @transform_2, window_bounds = array<i64: 1, 8, 256>}, {transform_indices = @transform_3, window_bounds = array<i64: 1, 8, 128>}]} {
    %c0 = arith.constant 0 : index
    %c0_0 = arith.constant 0 : index
    %c0_1 = arith.constant 0 : index
    %0 = vector.load %arg2[%c0, %c0_0, %c0_1] : memref<1x4x326xbf16, #tpu.memory_space<vmem>>, vector<1x4x326xbf16>
    %1 = vector.shape_cast %0 : vector<1x4x326xbf16> to vector<4x326xbf16>
    %cst = arith.constant 0.000000e+00 : f32
    %2 = vector.broadcast %cst : f32 to vector<8x288xf32>
    %c0_2 = arith.constant 0 : index
    %c0_3 = arith.constant 0 : index
    %c0_4 = arith.constant 0 : index
    %3 = vector.load %arg1[%c0_2, %c0_3, %c0_4] : memref<9x8x4xbf16, #tpu.memory_space<vmem>>, vector<1x8x4xbf16>
    %4 = vector.shape_cast %3 : vector<1x8x4xbf16> to vector<8x4xbf16>
    %5 = vector.extract_strided_slice %1 {offsets = [0, 0], sizes = [4, 288], strides = [1, 1]} : vector<4x326xbf16> to vector<4x288xbf16>
    %cst_5 = arith.constant dense<0.000000e+00> : vector<8x288xf32>
    %6 = tpu.matmul %4, %5, %cst_5 {dimension_numbers = #tpu.dot_dimension_numbers<[1], [0], [0], [1], [0, 0, 1, 1], [], []>} : vector<8x4xbf16>, vector<4x288xbf16>, vector<8x288xf32> -> vector<8x288xf32>
    %7 = arith.addf %2, %6 : vector<8x288xf32>
    %c1 = arith.constant 1 : index
    %c0_6 = arith.constant 0 : index
    %c0_7 = arith.constant 0 : index
    %8 = vector.load %arg1[%c1, %c0_6, %c0_7] : memref<9x8x4xbf16, #tpu.memory_space<vmem>>, vector<1x8x4xbf16>
    %9 = vector.shape_cast %8 : vector<1x8x4xbf16> to vector<8x4xbf16>
    %10 = vector.extract_strided_slice %1 {offsets = [0, 1], sizes = [4, 288], strides = [1, 1]} : vector<4x326xbf16> to vector<4x288xbf16>
    %cst_8 = arith.constant dense<0.000000e+00> : vector<8x288xf32>
    %11 = tpu.matmul %9, %10, %cst_8 {dimension_numbers = #tpu.dot_dimension_numbers<[1], [0], [0], [1], [0, 0, 1, 1], [], []>} : vector<8x4xbf16>, vector<4x288xbf16>, vector<8x288xf32> -> vector<8x288xf32>
    %12 = arith.addf %7, %11 : vector<8x288xf32>
    %c2 = arith.constant 2 : index
    %c0_9 = arith.constant 0 : index
    %c0_10 = arith.constant 0 : index
    %13 = vector.load %arg1[%c2, %c0_9, %c0_10] : memref<9x8x4xbf16, #tpu.memory_space<vmem>>, vector<1x8x4xbf16>
    %14 = vector.shape_cast %13 : vector<1x8x4xbf16> to vector<8x4xbf16>
    %15 = vector.extract_strided_slice %1 {offsets = [0, 2], sizes = [4, 288], strides = [1, 1]} : vector<4x326xbf16> to vector<4x288xbf16>
    %cst_11 = arith.constant dense<0.000000e+00> : vector<8x288xf32>
    %16 = tpu.matmul %14, %15, %cst_11 {dimension_numbers = #tpu.dot_dimension_numbers<[1], [0], [0], [1], [0, 0, 1, 1], [], []>} : vector<8x4xbf16>, vector<4x288xbf16>, vector<8x288xf32> -> vector<8x288xf32>
    %17 = arith.addf %12, %16 : vector<8x288xf32>
    %c3 = arith.constant 3 : index
    %c0_12 = arith.constant 0 : index
    %c0_13 = arith.constant 0 : index
    %18 = vector.load %arg1[%c3, %c0_12, %c0_13] : memref<9x8x4xbf16, #tpu.memory_space<vmem>>, vector<1x8x4xbf16>
    %19 = vector.shape_cast %18 : vector<1x8x4xbf16> to vector<8x4xbf16>
    %20 = vector.extract_strided_slice %1 {offsets = [0, 18], sizes = [4, 288], strides = [1, 1]} : vector<4x326xbf16> to vector<4x288xbf16>
    %cst_14 = arith.constant dense<0.000000e+00> : vector<8x288xf32>
    %21 = tpu.matmul %19, %20, %cst_14 {dimension_numbers = #tpu.dot_dimension_numbers<[1], [0], [0], [1], [0, 0, 1, 1], [], []>} : vector<8x4xbf16>, vector<4x288xbf16>, vector<8x288xf32> -> vector<8x288xf32>
    %22 = arith.addf %17, %21 : vector<8x288xf32>
    %c4 = arith.constant 4 : index
    %c0_15 = arith.constant 0 : index
    %c0_16 = arith.constant 0 : index
    %23 = vector.load %arg1[%c4, %c0_15, %c0_16] : memref<9x8x4xbf16, #tpu.memory_space<vmem>>, vector<1x8x4xbf16>
    %24 = vector.shape_cast %23 : vector<1x8x4xbf16> to vector<8x4xbf16>
    %25 = vector.extract_strided_slice %1 {offsets = [0, 19], sizes = [4, 288], strides = [1, 1]} : vector<4x326xbf16> to vector<4x288xbf16>
    %cst_17 = arith.constant dense<0.000000e+00> : vector<8x288xf32>
    %26 = tpu.matmul %24, %25, %cst_17 {dimension_numbers = #tpu.dot_dimension_numbers<[1], [0], [0], [1], [0, 0, 1, 1], [], []>} : vector<8x4xbf16>, vector<4x288xbf16>, vector<8x288xf32> -> vector<8x288xf32>
    %27 = arith.addf %22, %26 : vector<8x288xf32>
    %c5 = arith.constant 5 : index
    %c0_18 = arith.constant 0 : index
    %c0_19 = arith.constant 0 : index
    %28 = vector.load %arg1[%c5, %c0_18, %c0_19] : memref<9x8x4xbf16, #tpu.memory_space<vmem>>, vector<1x8x4xbf16>
    %29 = vector.shape_cast %28 : vector<1x8x4xbf16> to vector<8x4xbf16>
    %30 = vector.extract_strided_slice %1 {offsets = [0, 20], sizes = [4, 288], strides = [1, 1]} : vector<4x326xbf16> to vector<4x288xbf16>
    %cst_20 = arith.constant dense<0.000000e+00> : vector<8x288xf32>
    %31 = tpu.matmul %29, %30, %cst_20 {dimension_numbers = #tpu.dot_dimension_numbers<[1], [0], [0], [1], [0, 0, 1, 1], [], []>} : vector<8x4xbf16>, vector<4x288xbf16>, vector<8x288xf32> -> vector<8x288xf32>
    %32 = arith.addf %27, %31 : vector<8x288xf32>
    %c6 = arith.constant 6 : index
    %c0_21 = arith.constant 0 : index
    %c0_22 = arith.constant 0 : index
    %33 = vector.load %arg1[%c6, %c0_21, %c0_22] : memref<9x8x4xbf16, #tpu.memory_space<vmem>>, vector<1x8x4xbf16>
    %34 = vector.shape_cast %33 : vector<1x8x4xbf16> to vector<8x4xbf16>
    %35 = vector.extract_strided_slice %1 {offsets = [0, 36], sizes = [4, 288], strides = [1, 1]} : vector<4x326xbf16> to vector<4x288xbf16>
    %cst_23 = arith.constant dense<0.000000e+00> : vector<8x288xf32>
    %36 = tpu.matmul %34, %35, %cst_23 {dimension_numbers = #tpu.dot_dimension_numbers<[1], [0], [0], [1], [0, 0, 1, 1], [], []>} : vector<8x4xbf16>, vector<4x288xbf16>, vector<8x288xf32> -> vector<8x288xf32>
    %37 = arith.addf %32, %36 : vector<8x288xf32>
    %c7 = arith.constant 7 : index
    %c0_24 = arith.constant 0 : index
    %c0_25 = arith.constant 0 : index
    %38 = vector.load %arg1[%c7, %c0_24, %c0_25] : memref<9x8x4xbf16, #tpu.memory_space<vmem>>, vector<1x8x4xbf16>
    %39 = vector.shape_cast %38 : vector<1x8x4xbf16> to vector<8x4xbf16>
    %40 = vector.extract_strided_slice %1 {offsets = [0, 37], sizes = [4, 288], strides = [1, 1]} : vector<4x326xbf16> to vector<4x288xbf16>
    %cst_26 = arith.constant dense<0.000000e+00> : vector<8x288xf32>
    %41 = tpu.matmul %39, %40, %cst_26 {dimension_numbers = #tpu.dot_dimension_numbers<[1], [0], [0], [1], [0, 0, 1, 1], [], []>} : vector<8x4xbf16>, vector<4x288xbf16>, vector<8x288xf32> -> vector<8x288xf32>
    %42 = arith.addf %37, %41 : vector<8x288xf32>
    %c8 = arith.constant 8 : index
    %c0_27 = arith.constant 0 : index
    %c0_28 = arith.constant 0 : index
    %43 = vector.load %arg1[%c8, %c0_27, %c0_28] : memref<9x8x4xbf16, #tpu.memory_space<vmem>>, vector<1x8x4xbf16>
    %44 = vector.shape_cast %43 : vector<1x8x4xbf16> to vector<8x4xbf16>
    %45 = vector.extract_strided_slice %1 {offsets = [0, 38], sizes = [4, 288], strides = [1, 1]} : vector<4x326xbf16> to vector<4x288xbf16>
    %cst_29 = arith.constant dense<0.000000e+00> : vector<8x288xf32>
    %46 = tpu.matmul %44, %45, %cst_29 {dimension_numbers = #tpu.dot_dimension_numbers<[1], [0], [0], [1], [0, 0, 1, 1], [], []>} : vector<8x4xbf16>, vector<4x288xbf16>, vector<8x288xf32> -> vector<8x288xf32>
    %47 = arith.addf %42, %46 : vector<8x288xf32>
    %48 = vector.extract_strided_slice %47 {offsets = [0, 0], sizes = [8, 16], strides = [1, 1]} : vector<8x288xf32> to vector<8x16xf32>
    %49 = vector.extract_strided_slice %47 {offsets = [0, 18], sizes = [8, 16], strides = [1, 1]} : vector<8x288xf32> to vector<8x16xf32>
    %50 = vector.extract_strided_slice %47 {offsets = [0, 36], sizes = [8, 16], strides = [1, 1]} : vector<8x288xf32> to vector<8x16xf32>
    %51 = vector.extract_strided_slice %47 {offsets = [0, 54], sizes = [8, 16], strides = [1, 1]} : vector<8x288xf32> to vector<8x16xf32>
    %52 = vector.extract_strided_slice %47 {offsets = [0, 72], sizes = [8, 16], strides = [1, 1]} : vector<8x288xf32> to vector<8x16xf32>
    %53 = vector.extract_strided_slice %47 {offsets = [0, 90], sizes = [8, 16], strides = [1, 1]} : vector<8x288xf32> to vector<8x16xf32>
    %54 = vector.extract_strided_slice %47 {offsets = [0, 108], sizes = [8, 16], strides = [1, 1]} : vector<8x288xf32> to vector<8x16xf32>
    %55 = vector.extract_strided_slice %47 {offsets = [0, 126], sizes = [8, 16], strides = [1, 1]} : vector<8x288xf32> to vector<8x16xf32>
    %56 = vector.extract_strided_slice %47 {offsets = [0, 144], sizes = [8, 16], strides = [1, 1]} : vector<8x288xf32> to vector<8x16xf32>
    %57 = vector.extract_strided_slice %47 {offsets = [0, 162], sizes = [8, 16], strides = [1, 1]} : vector<8x288xf32> to vector<8x16xf32>
    %58 = vector.extract_strided_slice %47 {offsets = [0, 180], sizes = [8, 16], strides = [1, 1]} : vector<8x288xf32> to vector<8x16xf32>
    %59 = vector.extract_strided_slice %47 {offsets = [0, 198], sizes = [8, 16], strides = [1, 1]} : vector<8x288xf32> to vector<8x16xf32>
    %60 = vector.extract_strided_slice %47 {offsets = [0, 216], sizes = [8, 16], strides = [1, 1]} : vector<8x288xf32> to vector<8x16xf32>
    %61 = vector.extract_strided_slice %47 {offsets = [0, 234], sizes = [8, 16], strides = [1, 1]} : vector<8x288xf32> to vector<8x16xf32>
    %62 = vector.extract_strided_slice %47 {offsets = [0, 252], sizes = [8, 16], strides = [1, 1]} : vector<8x288xf32> to vector<8x16xf32>
    %63 = vector.extract_strided_slice %47 {offsets = [0, 270], sizes = [8, 16], strides = [1, 1]} : vector<8x288xf32> to vector<8x16xf32>
    %64 = tpu.concatenate %48, %49, %50, %51, %52, %53, %54, %55, %56, %57, %58, %59, %60, %61, %62, %63 in 1 : vector<8x16xf32>, vector<8x16xf32>, vector<8x16xf32>, vector<8x16xf32>, vector<8x16xf32>, vector<8x16xf32>, vector<8x16xf32>, vector<8x16xf32>, vector<8x16xf32>, vector<8x16xf32>, vector<8x16xf32>, vector<8x16xf32>, vector<8x16xf32>, vector<8x16xf32>, vector<8x16xf32>, vector<8x16xf32> -> vector<8x256xf32>
    %65 = arith.truncf %64 : vector<8x256xf32> to vector<8x256xbf16>
    %c0_30 = arith.constant 0 : index
    %c0_31 = arith.constant 0 : index
    %c0_32 = arith.constant 0 : index
    %66 = vector.load %arg3[%c0_30, %c0_31, %c0_32] : memref<1x8x256xbf16, #tpu.memory_space<vmem>>, vector<1x8x256xbf16>
    %67 = vector.shape_cast %66 : vector<1x8x256xbf16> to vector<8x256xbf16>
    %68 = vector.shape_cast %65 : vector<8x256xbf16> to vector<1x8x256xbf16>
    tpu.vector_store %arg3[%c0_30, %c0_31, %c0_32], %68 {strides = array<i32>} : memref<1x8x256xbf16, #tpu.memory_space<vmem>>, vector<1x8x256xbf16>,
    %cst_33 = arith.constant dense<0.000000e+00> : vector<8xf32>
    %69 = vector.multi_reduction <add>, %64, %cst_33 [1] : vector<8x256xf32> to vector<8xf32>
    %70 = vector.shape_cast %69 : vector<8xf32> to vector<8x1xf32>
    %71 = arith.mulf %64, %64 : vector<8x256xf32>
    %cst_34 = arith.constant dense<0.000000e+00> : vector<8xf32>
    %72 = vector.multi_reduction <add>, %71, %cst_34 [1] : vector<8x256xf32> to vector<8xf32>
    %73 = vector.shape_cast %72 : vector<8xf32> to vector<8x1xf32>
    %cst_35 = arith.constant 0.000000e+00 : f32
    %74 = vector.broadcast %cst_35 : f32 to vector<8x126xf32>
    %75 = tpu.concatenate %70, %73, %74 in 1 : vector<8x1xf32>, vector<8x1xf32>, vector<8x126xf32> -> vector<8x128xf32>
    %c0_36 = arith.constant 0 : index
    %c0_37 = arith.constant 0 : index
    %c0_38 = arith.constant 0 : index
    %76 = vector.load %arg4[%c0_36, %c0_37, %c0_38] : memref<1x8x128xf32, #tpu.memory_space<vmem>>, vector<1x8x128xf32>
    %77 = vector.shape_cast %76 : vector<1x8x128xf32> to vector<8x128xf32>
    %78 = vector.shape_cast %75 : vector<8x128xf32> to vector<1x8x128xf32>
    tpu.vector_store %arg4[%c0_36, %c0_37, %c0_38], %78 {strides = array<i32>} : memref<1x8x128xf32, #tpu.memory_space<vmem>>, vector<1x8x128xf32>,
    return
  }
  func.func @transform_0(%arg0: i32) -> (i32, i32, i32) {
    %c0_i32 = arith.constant 0 : i32
    %c0_i32_0 = arith.constant 0 : i32
    %c0_i32_1 = arith.constant 0 : i32
    %c0_i32_2 = arith.constant 0 : i32
    return %c0_i32, %c0_i32_0, %c0_i32_1 : i32, i32, i32
  }
  func.func @transform_1(%arg0: i32) -> (i32, i32, i32) {
    %c0_i32 = arith.constant 0 : i32
    %c0_i32_0 = arith.constant 0 : i32
    %c0_i32_1 = arith.constant 0 : i32
    return %arg0, %c0_i32, %c0_i32_0 : i32, i32, i32
  }
  func.func @transform_2(%arg0: i32) -> (i32, i32, i32) {
    %c0_i32 = arith.constant 0 : i32
    %c0_i32_0 = arith.constant 0 : i32
    %c0_i32_1 = arith.constant 0 : i32
    return %arg0, %c0_i32, %c0_i32_0 : i32, i32, i32
  }
  func.func @transform_3(%arg0: i32) -> (i32, i32, i32) {
    %c0_i32 = arith.constant 0 : i32
    %c0_i32_0 = arith.constant 0 : i32
    %c0_i32_1 = arith.constant 0 : i32
    return %arg0, %c0_i32, %c0_i32_0 : i32, i32, i32
  }
}

module attributes {stable_mosaic.version = 11 : i64} {
  func.func @bn_relu_kernel(%arg0: i32, %arg1: memref<8x2xf32, #tpu.memory_space<vmem>>, %arg2: memref<1x8x256xbf16, #tpu.memory_space<vmem>>, %arg3: memref<1x8x256xf32, #tpu.memory_space<vmem>>) attributes {dimension_semantics = [#tpu.dimension_semantics<parallel>], iteration_bounds = array<i64: 2>, scalar_prefetch = 0 : i64, scratch_operands = 0 : i64, tpu.core_type = #tpu.core_type<tc>, window_params = [{pipeline_mode = #tpu.pipeline_mode<synchronous>, transform_indices = @transform_0, window_bounds = array<i64: 8, 2>}, {transform_indices = @transform_1, window_bounds = array<i64: 1, 8, 256>}, {transform_indices = @transform_2, window_bounds = array<i64: 1, 8, 256>}]} {
    %c0 = arith.constant 0 : index
    %c0_0 = arith.constant 0 : index
    %0 = vector.load %arg1[%c0, %c0_0] : memref<8x2xf32, #tpu.memory_space<vmem>>, vector<8x1xf32>
    %c0_1 = arith.constant 0 : index
    %c1 = arith.constant 1 : index
    %1 = vector.load %arg1[%c0_1, %c1] : memref<8x2xf32, #tpu.memory_space<vmem>>, vector<8x1xf32>
    %c0_2 = arith.constant 0 : index
    %c0_3 = arith.constant 0 : index
    %c0_4 = arith.constant 0 : index
    %2 = vector.load %arg2[%c0_2, %c0_3, %c0_4] : memref<1x8x256xbf16, #tpu.memory_space<vmem>>, vector<1x8x256xbf16>
    %3 = vector.shape_cast %2 : vector<1x8x256xbf16> to vector<8x256xbf16>
    %4 = arith.extf %3 : vector<8x256xbf16> to vector<8x256xf32>
    %5 = vector.broadcast %0 : vector<8x1xf32> to vector<8x256xf32>
    %6 = arith.mulf %4, %5 : vector<8x256xf32>
    %7 = vector.broadcast %1 : vector<8x1xf32> to vector<8x256xf32>
    %8 = arith.addf %6, %7 : vector<8x256xf32>
    %cst = arith.constant 0.000000e+00 : f32
    %9 = vector.broadcast %cst : f32 to vector<8x256xf32>
    %10 = arith.maximumf %8, %9 : vector<8x256xf32>
    %c0_5 = arith.constant 0 : index
    %c0_6 = arith.constant 0 : index
    %c0_7 = arith.constant 0 : index
    %11 = vector.load %arg3[%c0_5, %c0_6, %c0_7] : memref<1x8x256xf32, #tpu.memory_space<vmem>>, vector<1x8x256xf32>
    %12 = vector.shape_cast %11 : vector<1x8x256xf32> to vector<8x256xf32>
    %13 = vector.shape_cast %10 : vector<8x256xf32> to vector<1x8x256xf32>
    tpu.vector_store %arg3[%c0_5, %c0_6, %c0_7], %13 {strides = array<i32>} : memref<1x8x256xf32, #tpu.memory_space<vmem>>, vector<1x8x256xf32>,
    return
  }
  func.func @transform_0(%arg0: i32) -> (i32, i32) {
    %c0_i32 = arith.constant 0 : i32
    %c0_i32_0 = arith.constant 0 : i32
    %c0_i32_1 = arith.constant 0 : i32
    return %c0_i32, %c0_i32_0 : i32, i32
  }
  func.func @transform_1(%arg0: i32) -> (i32, i32, i32) {
    %c0_i32 = arith.constant 0 : i32
    %c0_i32_0 = arith.constant 0 : i32
    %c0_i32_1 = arith.constant 0 : i32
    return %arg0, %c0_i32, %c0_i32_0 : i32, i32, i32
  }
  func.func @transform_2(%arg0: i32) -> (i32, i32, i32) {
    %c0_i32 = arith.constant 0 : i32
    %c0_i32_0 = arith.constant 0 : i32
    %c0_i32_1 = arith.constant 0 : i32
    return %arg0, %c0_i32, %c0_i32_0 : i32, i32, i32
  }
}

</mosaic_0001>

<llo_original>
// kernel: conv_block.3
$region0: #{conv_block.3}
  #allocation0 [shape = 'u32[]', space=smem, size = 0x4, offset = 0x4, fixed_abs, tag = 'smem constant byte address 0x4 - core index']
  #allocation1 [shape = 'u32[72,128]{1,0:T(1,128)}', space=vmem, size = 0x9000, scoped, tag = 'internal scratch']
  %s0 = inlined_call_operand.vmem [shape: f32[8,2], index: 0, kind: input, shape index: {}]
  %s1 = inlined_call_operand.vmem [shape: bf16[2,8,256], index: 1, kind: input, shape index: {}]
  %s2 = inlined_call_operand.vmem [shape: f32[2,8,256], index: 2, kind: output, shape index: {}]
  %s3 = sld [smem:[#allocation0]]
  $region41: #{conv_block.3} parent=0
    _
  %s5 = ssub.s32 1, %s3
  %s6 = scalar_select 0, %s5, %s3
  loop: start=0, step=1, limit=4
  $region2: #{conv_block.3} parent=0 // loop_pre_header
    _
  $region3: #{conv_block.3} parent=0 // loop_header
    %s8 = sphi 0, %s12
    %p9 = scmp.ge.s32.totalorder %s8, 4
    %s16 = sphi 0, %s16
    %s18 = sphi 0, %s16
    %s19 = sphi 0, %s18
    %s33 = sphi 0, %s19
    %s39 = sphi 0, %s41
    %s42 = sphi 0, %s39
    %s43 = sphi 0, %s42
    %s59 = sphi 0, %s43
    %s65 = sphi 0, %s67
    %s68 = sphi 0, %s65
    %s69 = sphi 0, %s68
    %s85 = sphi 0, %s69
  $region4: #{conv_block.3} parent=0 // loop_header_branch
    %11 = sbr.rel (%p9) target = $region8
  $region5: #{conv_block.3} parent=0 // loop_body
    %s13 = ssub.s32 %s8, 1
    %s14 = ssub.s32 %s8, 2
    %s15 = sadd.s32 %s8, 1
    %s17 = sadd.s32 %s16, 1
    %p20 = scmp.eq.s32.totalorder %s8, 1
    %p21 = scmp.ne.s32.totalorder %s16, %s18
    %p22 = scmp.eq.s32.totalorder %s8, 0
    %p23 = por %p21, %p22
    %p24 = scmp.ne.s32.totalorder %s16, %s18
    %p25 = scmp.eq.s32.totalorder %s13, 1
    %p26 = por %p24, %p25
    %p27 = scmp.ne.s32.totalorder %s18, %s19
    %p28 = scmp.eq.s32.totalorder %s13, 0
    %p29 = por %p27, %p28
    %p30 = scmp.ne.s32.totalorder %s18, %s19
    %p31 = scmp.eq.s32.totalorder %s14, 1
    %p32 = por %p30, %p31
    %p34 = scmp.ne.s32.totalorder %s19, %s33
    %p35 = scmp.eq.s32.totalorder %s14, 0
    %p36 = por %p34, %p35
    %s37 = ssub.s32 %s8, %s15
    %p38 = scmp.eq.s32.totalorder %s37, 0
    %s40 = sadd.s32 %s39, 1
    %s41 = scalar_select %p38, %s39, %s40
    %p44 = pneg %p38
    %p45 = scmp.eq.s32.totalorder %s8, 1
    %p46 = por %p44, %p45
    %p47 = scmp.ne.s32.totalorder %s39, %s42
    %p48 = scmp.eq.s32.totalorder %s8, 0
    %p49 = por %p47, %p48
    %p50 = scmp.ne.s32.totalorder %s39, %s42
    %p51 = scmp.eq.s32.totalorder %s13, 1
    %p52 = por %p50, %p51
    %p53 = scmp.ne.s32.totalorder %s42, %s43
    %p54 = scmp.eq.s32.totalorder %s13, 0
    %p55 = por %p53, %p54
    %p56 = scmp.ne.s32.totalorder %s42, %s43
    %p57 = scmp.eq.s32.totalorder %s14, 1
    %p58 = por %p56, %p57
    %p60 = scmp.ne.s32.totalorder %s43, %s59
    %p61 = scmp.eq.s32.totalorder %s14, 0
    %p62 = por %p60, %p61
    %s63 = ssub.s32 %s8, %s15
    %p64 = scmp.eq.s32.totalorder %s63, 0
    %s66 = sadd.s32 %s65, 1
    %s67 = scalar_select %p64, %s65, %s66
    %p70 = pneg %p64
    %p71 = scmp.eq.s32.totalorder %s8, 1
    %p72 = por %p70, %p71
    %p73 = scmp.ne.s32.totalorder %s65, %s68
    %p74 = scmp.eq.s32.totalorder %s8, 0
    %p75 = por %p73, %p74
    %p76 = scmp.ne.s32.totalorder %s65, %s68
    %p77 = scmp.eq.s32.totalorder %s13, 1
    %p78 = por %p76, %p77
    %p79 = scmp.ne.s32.totalorder %s68, %s69
    %p80 = scmp.eq.s32.totalorder %s13, 0
    %p81 = por %p79, %p80
    %p82 = scmp.ne.s32.totalorder %s68, %s69
    %p83 = scmp.eq.s32.totalorder %s14, 1
    %p84 = por %p82, %p83
    %p86 = scmp.ne.s32.totalorder %s69, %s85
    %p87 = scmp.eq.s32.totalorder %s14, 0
    %p88 = por %p86, %p87
    %p89 = scmp.le.s32.totalorder 1, %s8
    %p90 = scmp.lt.s32.totalorder %s8, 3
    %p91 = pnand %p89, %p90
    %p92 = pneg %p91
    // Predicated region
    $region9: #{conv_block.3} parent=5 // pred_check
      _
    $region10: #{conv_block.3} parent=5 // pred_check_branch
      %94 = sbr.rel (%p91) target = $region12
    $region11: #{conv_block.3} parent=5 // pred_region
      %s95 = ssub.s32 %s8, 1
      // Predicated region
      $region13: #{conv_block.3} parent=11 // pred_check
        %p96 = pneg %p29
      $region14: #{conv_block.3} parent=11 // pred_check_branch
        %98 = sbr.rel (%p96) target = $region16
      $region15: #{conv_block.3} parent=11 // pred_region
        _
      $region16: #{conv_block.3} parent=11 // pred_fallthru
        _
    $region12: #{conv_block.3} parent=5 // pred_fallthru
      _
    %p99 = scmp.lt.s32.totalorder %s8, 2
    // Predicated region
    $region17: #{conv_block.3} parent=5 // pred_check
      %p100 = pneg %p99
    $region18: #{conv_block.3} parent=5 // pred_check_branch
      %102 = sbr.rel (%p100) target = $region20
    $region19: #{conv_block.3} parent=5 // pred_region
      // Predicated region
      $region21: #{conv_block.3} parent=19 // pred_check
        %p103 = pneg %p49
      $region22: #{conv_block.3} parent=19 // pred_check_branch
        %105 = sbr.rel (%p103) target = $region24
      $region23: #{conv_block.3} parent=19 // pred_region
        %p106 = scmp.lt.s32.totalorder %s8, 1
        %s107 = scalar_select %p106, %s8, 1
        %s108 = smul.addr %s107, 2
        %s109 = smul.addr %s108, 4
        %s110 = scalar_lea.vmem %s1, %s109
      $region24: #{conv_block.3} parent=19 // pred_fallthru
        _
    $region20: #{conv_block.3} parent=5 // pred_fallthru
      _
    %p111 = scmp.le.s32.totalorder 1, %s8
    %p112 = scmp.lt.s32.totalorder %s8, 3
    %p113 = pnand %p111, %p112
    %p114 = pneg %p113
    // Predicated region
    $region25: #{conv_block.3} parent=5 // pred_check
      _
    $region26: #{conv_block.3} parent=5 // pred_check_branch
      %116 = sbr.rel (%p113) target = $region28
    $region27: #{conv_block.3} parent=5 // pred_region
      %s117 = ssub.s32 %s8, 1
      %p118 = pneg %p29
      %p119 = pneg %p26
      %p120 = scmp.lt.s32.totalorder %s13, 1
      %s121 = scalar_select %p120, %s13, 1
      %s122 = smul.addr %s121, 2
      %s123 = smul.addr %s122, 4
      %s124 = scalar_lea.vmem %s1, %s123
      %p125 = pneg %p55
      %p126 = pneg %p52
      %p127 = pneg %p81
      %p128 = pneg %p78
      %p129 = scmp.lt.s32.totalorder %s13, 1
      %s130 = scalar_select %p129, %s13, 1
      %s131 = smul.addr %s130, 2
      %s132 = smul.addr %s131, 8
      %s133 = scalar_lea.vmem %s2, %s132
      %p134 = scmp.lt.s32.totalorder %s13, 1
      %s135 = scalar_select %p134, %s13, 1
      %s136 = smul.addr %s135, 2
      %s137 = smul.addr %s136, 4
      %s138 = scalar_lea.vmem %s1, %s137
      %p139 = scmp.lt.s32.totalorder %s13, 1
      %s140 = scalar_select %p139, %s13, 1
      %s141 = smul.addr %s140, 2
      %s142 = smul.addr %s141, 8
      %s143 = scalar_lea.vmem %s2, %s142
      %v144 = vld [vmem:[%s0] sm:$0xff]
      %v145 = vld [vmem:[%s138] sm:$0xff]
      %v146 = vunpack.c.l.bf16 %v145
      %v147 = vunpack.c.h.bf16 %v145
      %149 = vset.pattern.permute.xlu0 0
      %150 = vperm.xlu0 %149, %v144
      %v151 = vpop.permute.xlu0 %150
      %v153 = vmul.f32 %v146, %v151
      %v154 = vmul.f32 %v147, %v151
      %155 = vset.pattern.permute.xlu0 1
      %156 = vperm.xlu0 %155, %v144
      %v157 = vpop.permute.xlu0 %156
      %v159 = vadd.f32 %v153, %v157
      %v160 = vadd.f32 %v154, %v157
      %v161 = vmax.f32 %v159, 0.0
      %v162 = vmax.f32 %v160, 0.0
      %163 = vst [vmem:[%s143] sm:$0xff] %v161
      %164 = vst [vmem:[%s143 + $0x8] sm:$0xff] %v162
      %p165 = scmp.lt.s32.totalorder %s13, 1
      %s166 = scalar_select %p165, %s13, 1
      %s167 = smul.addr %s166, 2
      %s168 = smul.addr %s167, 8
      %s169 = scalar_lea.vmem %s2, %s168
      // Predicated region
      $region29: #{conv_block.3} parent=27 // pred_check
        %p170 = pneg %p78
      $region30: #{conv_block.3} parent=27 // pred_check_branch
        %172 = sbr.rel (%p170) target = $region32
      $region31: #{conv_block.3} parent=27 // pred_region
        _
      $region32: #{conv_block.3} parent=27 // pred_fallthru
        _
    $region28: #{conv_block.3} parent=5 // pred_fallthru
      _
    %p173 = scmp.le.s32.totalorder 2, %s8
    // Predicated region
    $region33: #{conv_block.3} parent=5 // pred_check
      %p174 = pneg %p173
    $region34: #{conv_block.3} parent=5 // pred_check_branch
      %176 = sbr.rel (%p174) target = $region36
    $region35: #{conv_block.3} parent=5 // pred_region
      %s177 = ssub.s32 %s8, 2
      // Predicated region
      $region37: #{conv_block.3} parent=35 // pred_check
        %p178 = pneg %p84
      $region38: #{conv_block.3} parent=35 // pred_check_branch
        %180 = sbr.rel (%p178) target = $region40
      $region39: #{conv_block.3} parent=35 // pred_region
        %p181 = scmp.lt.s32.totalorder %s14, 1
        %s182 = scalar_select %p181, %s14, 1
        %s183 = smul.addr %s182, 2
        %s184 = smul.addr %s183, 8
        %s185 = scalar_lea.vmem %s2, %s184
      $region40: #{conv_block.3} parent=35 // pred_fallthru
        _
    $region36: #{conv_block.3} parent=5 // pred_fallthru
      _
  $region6: #{conv_block.3} parent=0 // loop_footer
    %s12 = sadd.s32 1, %s8
  $region7: #{conv_block.3} parent=0 // loop_footer_branch
    %7 = sbr.rel target = $region3
  $region8: #{conv_block.3} parent=0 // loop_exit
    _

// kernel: conv_block.2
$region0: #{conv_block.2}
  #allocation0 [shape = 'u32[]', space=smem, size = 0x4, offset = 0x4, fixed_abs, tag = 'smem constant byte address 0x4 - core index']
  #allocation1 [shape = 'u32[72,128]{1,0:T(1,128)}', space=vmem, size = 0x9000, scoped, tag = 'internal scratch']
  %s0 = inlined_call_operand.vmem [shape: bf16[9,8,4], index: 0, kind: input, shape index: {}]
  %s1 = inlined_call_operand.vmem [shape: bf16[2,4,326], index: 1, kind: input, shape index: {}]
  %s2 = inlined_call_operand.vmem [shape: bf16[2,8,256], index: 2, kind: output, shape index: {0}]
  %s3 = inlined_call_operand.vmem [shape: f32[2,8,128], index: 3, kind: output, shape index: {1}]
  %4 = xla_tuple %s2, %s3
  %s5 = sld [smem:[#allocation0]]
  $region49: #{conv_block.2} parent=0
    _
  %s7 = ssub.s32 1, %s5
  %s8 = scalar_select 0, %s7, %s5
  loop: start=0, step=1, limit=4
  $region2: #{conv_block.2} parent=0 // loop_pre_header
    _
  $region3: #{conv_block.2} parent=0 // loop_header
    %s10 = sphi 0, %s14
    %p11 = scmp.ge.s32.totalorder %s10, 4
    %s18 = sphi 0, %s18
    %s20 = sphi 0, %s18
    %s21 = sphi 0, %s20
    %s35 = sphi 0, %s21
    %s41 = sphi 0, %s43
    %s44 = sphi 0, %s41
    %s45 = sphi 0, %s44
    %s61 = sphi 0, %s45
    %s67 = sphi 0, %s69
    %s70 = sphi 0, %s67
    %s71 = sphi 0, %s70
    %s87 = sphi 0, %s71
    %s93 = sphi 0, %s95
    %s96 = sphi 0, %s93
    %s97 = sphi 0, %s96
    %s113 = sphi 0, %s97
  $region4: #{conv_block.2} parent=0 // loop_header_branch
    %13 = sbr.rel (%p11) target = $region8
  $region5: #{conv_block.2} parent=0 // loop_body
    %s15 = ssub.s32 %s10, 1
    %s16 = ssub.s32 %s10, 2
    %s17 = sadd.s32 %s10, 1
    %s19 = sadd.s32 %s18, 1
    %p22 = scmp.eq.s32.totalorder %s10, 1
    %p23 = scmp.ne.s32.totalorder %s18, %s20
    %p24 = scmp.eq.s32.totalorder %s10, 0
    %p25 = por %p23, %p24
    %p26 = scmp.ne.s32.totalorder %s18, %s20
    %p27 = scmp.eq.s32.totalorder %s15, 1
    %p28 = por %p26, %p27
    %p29 = scmp.ne.s32.totalorder %s20, %s21
    %p30 = scmp.eq.s32.totalorder %s15, 0
    %p31 = por %p29, %p30
    %p32 = scmp.ne.s32.totalorder %s20, %s21
    %p33 = scmp.eq.s32.totalorder %s16, 1
    %p34 = por %p32, %p33
    %p36 = scmp.ne.s32.totalorder %s21, %s35
    %p37 = scmp.eq.s32.totalorder %s16, 0
    %p38 = por %p36, %p37
    %s39 = ssub.s32 %s10, %s17
    %p40 = scmp.eq.s32.totalorder %s39, 0
    %s42 = sadd.s32 %s41, 1
    %s43 = scalar_select %p40, %s41, %s42
    %p46 = pneg %p40
    %p47 = scmp.eq.s32.totalorder %s10, 1
    %p48 = por %p46, %p47
    %p49 = scmp.ne.s32.totalorder %s41, %s44
    %p50 = scmp.eq.s32.totalorder %s10, 0
    %p51 = por %p49, %p50
    %p52 = scmp.ne.s32.totalorder %s41, %s44
    %p53 = scmp.eq.s32.totalorder %s15, 1
    %p54 = por %p52, %p53
    %p55 = scmp.ne.s32.totalorder %s44, %s45
    %p56 = scmp.eq.s32.totalorder %s15, 0
    %p57 = por %p55, %p56
    %p58 = scmp.ne.s32.totalorder %s44, %s45
    %p59 = scmp.eq.s32.totalorder %s16, 1
    %p60 = por %p58, %p59
    %p62 = scmp.ne.s32.totalorder %s45, %s61
    %p63 = scmp.eq.s32.totalorder %s16, 0
    %p64 = por %p62, %p63
    %s65 = ssub.s32 %s10, %s17
    %p66 = scmp.eq.s32.totalorder %s65, 0
    %s68 = sadd.s32 %s67, 1
    %s69 = scalar_select %p66, %s67, %s68
    %p72 = pneg %p66
    %p73 = scmp.eq.s32.totalorder %s10, 1
    %p74 = por %p72, %p73
    %p75 = scmp.ne.s32.totalorder %s67, %s70
    %p76 = scmp.eq.s32.totalorder %s10, 0
    %p77 = por %p75, %p76
    %p78 = scmp.ne.s32.totalorder %s67, %s70
    %p79 = scmp.eq.s32.totalorder %s15, 1
    %p80 = por %p78, %p79
    %p81 = scmp.ne.s32.totalorder %s70, %s71
    %p82 = scmp.eq.s32.totalorder %s15, 0
    %p83 = por %p81, %p82
    %p84 = scmp.ne.s32.totalorder %s70, %s71
    %p85 = scmp.eq.s32.totalorder %s16, 1
    %p86 = por %p84, %p85
    %p88 = scmp.ne.s32.totalorder %s71, %s87
    %p89 = scmp.eq.s32.totalorder %s16, 0
    %p90 = por %p88, %p89
    %s91 = ssub.s32 %s10, %s17
    %p92 = scmp.eq.s32.totalorder %s91, 0
    %s94 = sadd.s32 %s93, 1
    %s95 = scalar_select %p92, %s93, %s94
    %p98 = pneg %p92
    %p99 = scmp.eq.s32.totalorder %s10, 1
    %p100 = por %p98, %p99
    %p101 = scmp.ne.s32.totalorder %s93, %s96
    %p102 = scmp.eq.s32.totalorder %s10, 0
    %p103 = por %p101, %p102
    %p104 = scmp.ne.s32.totalorder %s93, %s96
    %p105 = scmp.eq.s32.totalorder %s15, 1
    %p106 = por %p104, %p105
    %p107 = scmp.ne.s32.totalorder %s96, %s97
    %p108 = scmp.eq.s32.totalorder %s15, 0
    %p109 = por %p107, %p108
    %p110 = scmp.ne.s32.totalorder %s96, %s97
    %p111 = scmp.eq.s32.totalorder %s16, 1
    %p112 = por %p110, %p111
    %p114 = scmp.ne.s32.totalorder %s97, %s113
    %p115 = scmp.eq.s32.totalorder %s16, 0
    %p116 = por %p114, %p115
    %p117 = scmp.le.s32.totalorder 1, %s10
    %p118 = scmp.lt.s32.totalorder %s10, 3
    %p119 = pnand %p117, %p118
    %p120 = pneg %p119
    // Predicated region
    $region9: #{conv_block.2} parent=5 // pred_check
      _
    $region10: #{conv_block.2} parent=5 // pred_check_branch
      %122 = sbr.rel (%p119) target = $region12
    $region11: #{conv_block.2} parent=5 // pred_region
      %s123 = ssub.s32 %s10, 1
      // Predicated region
      $region13: #{conv_block.2} parent=11 // pred_check
        %p124 = pneg %p31
      $region14: #{conv_block.2} parent=11 // pred_check_branch
        %126 = sbr.rel (%p124) target = $region16
      $region15: #{conv_block.2} parent=11 // pred_region
        _
      $region16: #{conv_block.2} parent=11 // pred_fallthru
        _
    $region12: #{conv_block.2} parent=5 // pred_fallthru
      _
    %p127 = scmp.lt.s32.totalorder %s10, 2
    // Predicated region
    $region17: #{conv_block.2} parent=5 // pred_check
      %p128 = pneg %p127
    $region18: #{conv_block.2} parent=5 // pred_check_branch
      %130 = sbr.rel (%p128) target = $region20
    $region19: #{conv_block.2} parent=5 // pred_region
      // Predicated region
      $region21: #{conv_block.2} parent=19 // pred_check
        %p131 = pneg %p51
      $region22: #{conv_block.2} parent=19 // pred_check_branch
        %133 = sbr.rel (%p131) target = $region24
      $region23: #{conv_block.2} parent=19 // pred_region
        %p134 = scmp.lt.s32.totalorder %s10, 1
        %s135 = scalar_select %p134, %s10, 1
        %s136 = smul.addr %s135, 3
        %s137 = smul.addr %s136, 2
        %s138 = scalar_lea.vmem %s1, %s137
      $region24: #{conv_block.2} parent=19 // pred_fallthru
        _
    $region20: #{conv_block.2} parent=5 // pred_fallthru
      _
    %p139 = scmp.le.s32.totalorder 1, %s10
    %p140 = scmp.lt.s32.totalorder %s10, 3
    %p141 = pnand %p139, %p140
    %p142 = pneg %p141
    // Predicated region
    $region25: #{conv_block.2} parent=5 // pred_check
      _
    $region26: #{conv_block.2} parent=5 // pred_check_branch
      %144 = sbr.rel (%p141) target = $region28
    $region27: #{conv_block.2} parent=5 // pred_region
      %s145 = ssub.s32 %s10, 1
      %p146 = pneg %p31
      %p147 = pneg %p28
      %p148 = scmp.lt.s32.totalorder %s15, 1
      %s149 = scalar_select %p148, %s15, 1
      %s150 = smul.addr %s149, 3
      %s151 = smul.addr %s150, 2
      %s152 = scalar_lea.vmem %s1, %s151
      %p153 = pneg %p57
      %p154 = pneg %p54
      %p155 = pneg %p83
      %p156 = pneg %p80
      %p157 = scmp.lt.s32.totalorder %s15, 1
      %s158 = scalar_select %p157, %s15, 1
      %s159 = smul.addr %s158, 2
      %s160 = smul.addr %s159, 4
      %s161 = scalar_lea.vmem %s2, %s160
      %p162 = pneg %p109
      %p163 = pneg %p106
      %p164 = scmp.lt.s32.totalorder %s15, 1
      %s165 = scalar_select %p164, %s15, 1
      %s166 = smul.addr %s165, 8
      %s167 = scalar_lea.vmem %s3, %s166
      %p168 = scmp.lt.s32.totalorder %s15, 1
      %s169 = scalar_select %p168, %s15, 1
      %s170 = smul.addr %s169, 3
      %s171 = smul.addr %s170, 2
      %s172 = scalar_lea.vmem %s1, %s171
      %p173 = scmp.lt.s32.totalorder %s15, 1
      %s174 = scalar_select %p173, %s15, 1
      %s175 = smul.addr %s174, 2
      %s176 = smul.addr %s175, 4
      %s177 = scalar_lea.vmem %s2, %s176
      %p178 = scmp.lt.s32.totalorder %s15, 1
      %s179 = scalar_select %p178, %s15, 1
      %s180 = smul.addr %s179, 8
      %s181 = scalar_lea.vmem %s3, %s180
      %v183 = vld [vmem:[%s172] sm:$0x3f]
      %v184 = vld [vmem:[%s0] sm:$0xf]
      %s185 = scalar_lea.vmem %s0, 4
      %v186 = vld [vmem:[%s185] sm:$0xf]
      %188 = vst [vmem:[#allocation1] ss:$4 sm:$0xff] %v183
      %v189 = vld.sshfl [vmem:[#allocation1] sm:$0xff pattern:$0x73625140]
      %v191 = vld.sshfl [vmem:[#allocation1 + $0x8] sm:$0xff pattern:$0x73625140]
      %v193 = vld.sshfl [vmem:[#allocation1 + $0x10] sm:$0xff pattern:$0x73625140]
      %195 = vrot.lane.b32.xlu0 %v189, 127
      %v196 = vpop.permute.xlu0 %195
      %197 = vrot.lane.b32.xlu0 %v191, 127
      %v198 = vpop.permute.xlu0 %197
      %199 = vrot.lane.b32.xlu0 %v193, 127
      %v200 = vpop.permute.xlu0 %199
      %vm201 = vcmask 1039360
      %v202 = vsel %vm201, %v196, %v198
      %v203 = vsel %vm201, %v198, %v200
      %vm204 = vcmask 31744
      %v206 = vsel %vm204, %v186, 0
      %vm208 = vcmask 1041408
      %v210 = vsel %vm208, %v202, 0
      %v213 = vsel %vm208, %v203, 0
      %v216 = vsel %vm208, %v200, 0
      %218 = vmatpush.bf16.msra.mxu0 0
      %219 = vmatpush.bf16.msra.mxu0 0
      %220 = vmatpush.bf16.msra.mxu0 0
      %221 = vmatpush.bf16.msra.mxu0 0
      %222 = vmatpush.bf16.msra.mxu0 0
      %223 = vmatpush.bf16.msra.mxu0 0
      %224 = vmatpush.bf16.msra.mxu0 0
      %225 = vmatpush.bf16.msra.mxu0 %v210
      %226 = vmatmul.bf16.gmra.mxu0 %v206
      %v227 = vpop.f32.mrf.mxu0
      %v228 = vadd.f32 0.0, %v227
      %v229 = vpop.f32.mrf.mxu0
      %230 = vdwg.mxu0
      %231 = vmatpush.bf16.msra.mxu0 0
      %232 = vmatpush.bf16.msra.mxu0 0
      %233 = vmatpush.bf16.msra.mxu0 0
      %234 = vmatpush.bf16.msra.mxu0 0
      %235 = vmatpush.bf16.msra.mxu0 0
      %236 = vmatpush.bf16.msra.mxu0 0
      %237 = vmatpush.bf16.msra.mxu0 0
      %238 = vmatpush.bf16.msra.mxu0 %v213
      %239 = vmatmul.bf16.gmra.mxu0 %v206
      %v240 = vpop.f32.mrf.mxu0
      %v241 = vadd.f32 0.0, %v240
      %v242 = vpop.f32.mrf.mxu0
      %243 = vdwg.mxu0
      %244 = vmatpush.bf16.msra.mxu0 0
      %245 = vmatpush.bf16.msra.mxu0 0
      %246 = vmatpush.bf16.msra.mxu0 0
      %247 = vmatpush.bf16.msra.mxu0 0
      %248 = vmatpush.bf16.msra.mxu0 0
      %249 = vmatpush.bf16.msra.mxu0 0
      %250 = vmatpush.bf16.msra.mxu0 0
      %251 = vmatpush.bf16.msra.mxu0 %v216
      %252 = vmatmul.bf16.gmra.mxu0 %v206
      %v253 = vpop.f32.mrf.mxu0
      %v254 = vadd.f32 0.0, %v253
      %v255 = vpop.f32.mrf.mxu0
      %256 = vdwg.mxu0
      %257 = vst [vmem:[#allocation1] ss:$4 sm:$0xff] %v183
      %v258 = vld.sshfl [vmem:[#allocation1] sm:$0xff pattern:$0x73625140]
      %v259 = vld.sshfl [vmem:[#allocation1 + $0x8] sm:$0xff pattern:$0x73625140]
      %v260 = vld.sshfl [vmem:[#allocation1 + $0x10] sm:$0xff pattern:$0x73625140]
      %v262 = vsel %vm204, %v184, 0
      %v264 = vsel %vm208, %v258, 0
      %v266 = vsel %vm208, %v259, 0
      %v268 = vsel %vm208, %v260, 0
      %270 = vmatpush.bf16.msra.mxu0 0
      %271 = vmatpush.bf16.msra.mxu0 0
      %272 = vmatpush.bf16.msra.mxu0 0
      %273 = vmatpush.bf16.msra.mxu0 0
      %274 = vmatpush.bf16.msra.mxu0 0
      %275 = vmatpush.bf16.msra.mxu0 0
      %276 = vmatpush.bf16.msra.mxu0 0
      %277 = vmatpush.bf16.msra.mxu0 %v264
      %278 = vmatmul.bf16.gmra.mxu0 %v262
      %v279 = vpop.f32.mrf.mxu0
      %v280 = vadd.f32 %v228, %v279
      %v281 = vpop.f32.mrf.mxu0
      %282 = vdwg.mxu0
      %283 = vmatpush.bf16.msra.mxu0 0
      %284 = vmatpush.bf16.msra.mxu0 0
      %285 = vmatpush.bf16.msra.mxu0 0
      %286 = vmatpush.bf16.msra.mxu0 0
      %287 = vmatpush.bf16.msra.mxu0 0
      %288 = vmatpush.bf16.msra.mxu0 0
      %289 = vmatpush.bf16.msra.mxu0 0
      %290 = vmatpush.bf16.msra.mxu0 %v266
      %291 = vmatmul.bf16.gmra.mxu0 %v262
      %v292 = vpop.f32.mrf.mxu0
      %v293 = vadd.f32 %v241, %v292
      %v294 = vpop.f32.mrf.mxu0
      %295 = vdwg.mxu0
      %296 = vmatpush.bf16.msra.mxu0 0
      %297 = vmatpush.bf16.msra.mxu0 0
      %298 = vmatpush.bf16.msra.mxu0 0
      %299 = vmatpush.bf16.msra.mxu0 0
      %300 = vmatpush.bf16.msra.mxu0 0
      %301 = vmatpush.bf16.msra.mxu0 0
      %302 = vmatpush.bf16.msra.mxu0 0
      %303 = vmatpush.bf16.msra.mxu0 %v268
      %304 = vmatmul.bf16.gmra.mxu0 %v262
      %v305 = vpop.f32.mrf.mxu0
      %v306 = vadd.f32 %v254, %v305
      %v307 = vpop.f32.mrf.mxu0
      %308 = vdwg.mxu0
      %s309 = scalar_lea.vmem %s0, 8
      %v310 = vld [vmem:[%s309] sm:$0xf]
      %311 = vst [vmem:[#allocation1] ss:$4 sm:$0xff] %v183
      %v312 = vld.sshfl [vmem:[#allocation1] sm:$0xff pattern:$0x73625140]
      %v314 = vld.sshfl [vmem:[#allocation1 + $0x8] sm:$0xff pattern:$0x73625140]
      %v316 = vld.sshfl [vmem:[#allocation1 + $0x10] sm:$0xff pattern:$0x73625140]
      %318 = vrot.lane.b32.xlu0 %v312, 126
      %v319 = vpop.permute.xlu0 %318
      %320 = vrot.lane.b32.xlu0 %v314, 126
      %v321 = vpop.permute.xlu0 %320
      %322 = vrot.lane.b32.xlu0 %v316, 126
      %v323 = vpop.permute.xlu0 %322
      %vm324 = vcmask 1031168
      %v325 = vsel %vm324, %v319, %v321
      %v326 = vsel %vm324, %v321, %v323
      %v328 = vsel %vm204, %v310, 0
      %v331 = vsel %vm208, %v325, 0
      %v334 = vsel %vm208, %v326, 0
      %v337 = vsel %vm208, %v323, 0
      %339 = vmatpush.bf16.msra.mxu0 0
      %340 = vmatpush.bf16.msra.mxu0 0
      %341 = vmatpush.bf16.msra.mxu0 0
      %342 = vmatpush.bf16.msra.mxu0 0
      %343 = vmatpush.bf16.msra.mxu0 0
      %344 = vmatpush.bf16.msra.mxu0 0
      %345 = vmatpush.bf16.msra.mxu0 0
      %346 = vmatpush.bf16.msra.mxu0 %v331
      %347 = vmatmul.bf16.gmra.mxu0 %v328
      %v348 = vpop.f32.mrf.mxu0
      %v349 = vadd.f32 0.0, %v348
      %v350 = vpop.f32.mrf.mxu0
      %351 = vdwg.mxu0
      %352 = vmatpush.bf16.msra.mxu0 0
      %353 = vmatpush.bf16.msra.mxu0 0
      %354 = vmatpush.bf16.msra.mxu0 0
      %355 = vmatpush.bf16.msra.mxu0 0
      %356 = vmatpush.bf16.msra.mxu0 0
      %357 = vmatpush.bf16.msra.mxu0 0
      %358 = vmatpush.bf16.msra.mxu0 0
      %359 = vmatpush.bf16.msra.mxu0 %v334
      %360 = vmatmul.bf16.gmra.mxu0 %v328
      %v361 = vpop.f32.mrf.mxu0
      %v362 = vadd.f32 0.0, %v361
      %v363 = vpop.f32.mrf.mxu0
      %364 = vdwg.mxu0
      %365 = vmatpush.bf16.msra.mxu0 0
      %366 = vmatpush.bf16.msra.mxu0 0
      %367 = vmatpush.bf16.msra.mxu0 0
      %368 = vmatpush.bf16.msra.mxu0 0
      %369 = vmatpush.bf16.msra.mxu0 0
      %370 = vmatpush.bf16.msra.mxu0 0
      %371 = vmatpush.bf16.msra.mxu0 0
      %372 = vmatpush.bf16.msra.mxu0 %v337
      %373 = vmatmul.bf16.gmra.mxu0 %v328
      %v374 = vpop.f32.mrf.mxu0
      %v375 = vadd.f32 0.0, %v374
      %v376 = vpop.f32.mrf.mxu0
      %377 = vdwg.mxu0
      %v378 = vadd.f32 %v280, %v349
      %v379 = vadd.f32 %v293, %v362
      %v380 = vadd.f32 %v306, %v375
      %s381 = scalar_lea.vmem %s0, 12
      %v382 = vld [vmem:[%s381] sm:$0xf]
      %383 = vst [vmem:[#allocation1] ss:$4 sm:$0xff] %v183
      %v384 = vld.sshfl [vmem:[#allocation1] sm:$0xff pattern:$0x73625140]
      %v386 = vld.sshfl [vmem:[#allocation1 + $0x8] sm:$0xff pattern:$0x73625140]
      %v388 = vld.sshfl [vmem:[#allocation1 + $0x10] sm:$0xff pattern:$0x73625140]
      %390 = vrot.lane.b32.xlu0 %v384, 110
      %v391 = vpop.permute.xlu0 %390
      %392 = vrot.lane.b32.xlu0 %v386, 110
      %v393 = vpop.permute.xlu0 %392
      %394 = vrot.lane.b32.xlu0 %v388, 110
      %v395 = vpop.permute.xlu0 %394
      %vm396 = vcmask 900096
      %v397 = vsel %vm396, %v391, %v393
      %v398 = vsel %vm396, %v393, %v395
      %v400 = vsel %vm204, %v382, 0
      %v403 = vsel %vm208, %v397, 0
      %v406 = vsel %vm208, %v398, 0
      %v409 = vsel %vm208, %v395, 0
      %411 = vmatpush.bf16.msra.mxu0 0
      %412 = vmatpush.bf16.msra.mxu0 0
      %413 = vmatpush.bf16.msra.mxu0 0
      %414 = vmatpush.bf16.msra.mxu0 0
      %415 = vmatpush.bf16.msra.mxu0 0
      %416 = vmatpush.bf16.msra.mxu0 0
      %417 = vmatpush.bf16.msra.mxu0 0
      %418 = vmatpush.bf16.msra.mxu0 %v403
      %419 = vmatmul.bf16.gmra.mxu0 %v400
      %v420 = vpop.f32.mrf.mxu0
      %v421 = vadd.f32 0.0, %v420
      %v422 = vpop.f32.mrf.mxu0
      %423 = vdwg.mxu0
      %424 = vmatpush.bf16.msra.mxu0 0
      %425 = vmatpush.bf16.msra.mxu0 0
      %426 = vmatpush.bf16.msra.mxu0 0
      %427 = vmatpush.bf16.msra.mxu0 0
      %428 = vmatpush.bf16.msra.mxu0 0
      %429 = vmatpush.bf16.msra.mxu0 0
      %430 = vmatpush.bf16.msra.mxu0 0
      %431 = vmatpush.bf16.msra.mxu0 %v406
      %432 = vmatmul.bf16.gmra.mxu0 %v400
      %v433 = vpop.f32.mrf.mxu0
      %v434 = vadd.f32 0.0, %v433
      %v435 = vpop.f32.mrf.mxu0
      %436 = vdwg.mxu0
      %437 = vmatpush.bf16.msra.mxu0 0
      %438 = vmatpush.bf16.msra.mxu0 0
      %439 = vmatpush.bf16.msra.mxu0 0
      %440 = vmatpush.bf16.msra.mxu0 0
      %441 = vmatpush.bf16.msra.mxu0 0
      %442 = vmatpush.bf16.msra.mxu0 0
      %443 = vmatpush.bf16.msra.mxu0 0
      %444 = vmatpush.bf16.msra.mxu0 %v409
      %445 = vmatmul.bf16.gmra.mxu0 %v400
      %v446 = vpop.f32.mrf.mxu0
      %v447 = vadd.f32 0.0, %v446
      %v448 = vpop.f32.mrf.mxu0
      %449 = vdwg.mxu0
      %v450 = vadd.f32 %v378, %v421
      %v451 = vadd.f32 %v379, %v434
      %v452 = vadd.f32 %v380, %v447
      %s453 = scalar_lea.vmem %s0, 16
      %v454 = vld [vmem:[%s453] sm:$0xf]
      %455 = vst [vmem:[#allocation1] ss:$4 sm:$0xff] %v183
      %v456 = vld.sshfl [vmem:[#allocation1] sm:$0xff pattern:$0x73625140]
      %v458 = vld.sshfl [vmem:[#allocation1 + $0x8] sm:$0xff pattern:$0x73625140]
      %v460 = vld.sshfl [vmem:[#allocation1 + $0x10] sm:$0xff pattern:$0x73625140]
      %462 = vrot.lane.b32.xlu0 %v456, 109
      %v463 = vpop.permute.xlu0 %462
      %464 = vrot.lane.b32.xlu0 %v458, 109
      %v465 = vpop.permute.xlu0 %464
      %466 = vrot.lane.b32.xlu0 %v460, 109
      %v467 = vpop.permute.xlu0 %466
      %vm468 = vcmask 891904
      %v469 = vsel %vm468, %v463, %v465
      %v470 = vsel %vm468, %v465, %v467
      %v472 = vsel %vm204, %v454, 0
      %v475 = vsel %vm208, %v469, 0
      %v478 = vsel %vm208, %v470, 0
      %v481 = vsel %vm208, %v467, 0
      %483 = vmatpush.bf16.msra.mxu0 0
      %484 = vmatpush.bf16.msra.mxu0 0
      %485 = vmatpush.bf16.msra.mxu0 0
      %486 = vmatpush.bf16.msra.mxu0 0
      %487 = vmatpush.bf16.msra.mxu0 0
      %488 = vmatpush.bf16.msra.mxu0 0
      %489 = vmatpush.bf16.msra.mxu0 0
      %490 = vmatpush.bf16.msra.mxu0 %v475
      %491 = vmatmul.bf16.gmra.mxu0 %v472
      %v492 = vpop.f32.mrf.mxu0
      %v493 = vadd.f32 0.0, %v492
      %v494 = vpop.f32.mrf.mxu0
      %495 = vdwg.mxu0
      %496 = vmatpush.bf16.msra.mxu0 0
      %497 = vmatpush.bf16.msra.mxu0 0
      %498 = vmatpush.bf16.msra.mxu0 0
      %499 = vmatpush.bf16.msra.mxu0 0
      %500 = vmatpush.bf16.msra.mxu0 0
      %501 = vmatpush.bf16.msra.mxu0 0
      %502 = vmatpush.bf16.msra.mxu0 0
      %503 = vmatpush.bf16.msra.mxu0 %v478
      %504 = vmatmul.bf16.gmra.mxu0 %v472
      %v505 = vpop.f32.mrf.mxu0
      %v506 = vadd.f32 0.0, %v505
      %v507 = vpop.f32.mrf.mxu0
      %508 = vdwg.mxu0
      %509 = vmatpush.bf16.msra.mxu0 0
      %510 = vmatpush.bf16.msra.mxu0 0
      %511 = vmatpush.bf16.msra.mxu0 0
      %512 = vmatpush.bf16.msra.mxu0 0
      %513 = vmatpush.bf16.msra.mxu0 0
      %514 = vmatpush.bf16.msra.mxu0 0
      %515 = vmatpush.bf16.msra.mxu0 0
      %516 = vmatpush.bf16.msra.mxu0 %v481
      %517 = vmatmul.bf16.gmra.mxu0 %v472
      %v518 = vpop.f32.mrf.mxu0
      %v519 = vadd.f32 0.0, %v518
      %v520 = vpop.f32.mrf.mxu0
      %521 = vdwg.mxu0
      %v522 = vadd.f32 %v450, %v493
      %v523 = vadd.f32 %v451, %v506
      %v524 = vadd.f32 %v452, %v519
      %s525 = scalar_lea.vmem %s0, 20
      %v526 = vld [vmem:[%s525] sm:$0xf]
      %527 = vst [vmem:[#allocation1] ss:$4 sm:$0xff] %v183
      %v528 = vld.sshfl [vmem:[#allocation1] sm:$0xff pattern:$0x73625140]
      %v530 = vld.sshfl [vmem:[#allocation1 + $0x8] sm:$0xff pattern:$0x73625140]
      %v532 = vld.sshfl [vmem:[#allocation1 + $0x10] sm:$0xff pattern:$0x73625140]
      %534 = vrot.lane.b32.xlu0 %v528, 108
      %v535 = vpop.permute.xlu0 %534
      %536 = vrot.lane.b32.xlu0 %v530, 108
      %v537 = vpop.permute.xlu0 %536
      %538 = vrot.lane.b32.xlu0 %v532, 108
      %v539 = vpop.permute.xlu0 %538
      %vm540 = vcmask 883712
      %v541 = vsel %vm540, %v535, %v537
      %v542 = vsel %vm540, %v537, %v539
      %v544 = vsel %vm204, %v526, 0
      %v547 = vsel %vm208, %v541, 0
      %v550 = vsel %vm208, %v542, 0
      %v553 = vsel %vm208, %v539, 0
      %555 = vmatpush.bf16.msra.mxu0 0
      %556 = vmatpush.bf16.msra.mxu0 0
      %557 = vmatpush.bf16.msra.mxu0 0
      %558 = vmatpush.bf16.msra.mxu0 0
      %559 = vmatpush.bf16.msra.mxu0 0
      %560 = vmatpush.bf16.msra.mxu0 0
      %561 = vmatpush.bf16.msra.mxu0 0
      %562 = vmatpush.bf16.msra.mxu0 %v547
      %563 = vmatmul.bf16.gmra.mxu0 %v544
      %v564 = vpop.f32.mrf.mxu0
      %v565 = vadd.f32 0.0, %v564
      %v566 = vpop.f32.mrf.mxu0
      %567 = vdwg.mxu0
      %568 = vmatpush.bf16.msra.mxu0 0
      %569 = vmatpush.bf16.msra.mxu0 0
      %570 = vmatpush.bf16.msra.mxu0 0
      %571 = vmatpush.bf16.msra.mxu0 0
      %572 = vmatpush.bf16.msra.mxu0 0
      %573 = vmatpush.bf16.msra.mxu0 0
      %574 = vmatpush.bf16.msra.mxu0 0
      %575 = vmatpush.bf16.msra.mxu0 %v550
      %576 = vmatmul.bf16.gmra.mxu0 %v544
      %v577 = vpop.f32.mrf.mxu0
      %v578 = vadd.f32 0.0, %v577
      %v579 = vpop.f32.mrf.mxu0
      %580 = vdwg.mxu0
      %581 = vmatpush.bf16.msra.mxu0 0
      %582 = vmatpush.bf16.msra.mxu0 0
      %583 = vmatpush.bf16.msra.mxu0 0
      %584 = vmatpush.bf16.msra.mxu0 0
      %585 = vmatpush.bf16.msra.mxu0 0
      %586 = vmatpush.bf16.msra.mxu0 0
      %587 = vmatpush.bf16.msra.mxu0 0
      %588 = vmatpush.bf16.msra.mxu0 %v553
      %589 = vmatmul.bf16.gmra.mxu0 %v544
      %v590 = vpop.f32.mrf.mxu0
      %v591 = vadd.f32 0.0, %v590
      %v592 = vpop.f32.mrf.mxu0
      %593 = vdwg.mxu0
      %v594 = vadd.f32 %v522, %v565
      %v595 = vadd.f32 %v523, %v578
      %v596 = vadd.f32 %v524, %v591
      %s597 = scalar_lea.vmem %s0, 24
      %v598 = vld [vmem:[%s597] sm:$0xf]
      %599 = vst [vmem:[#allocation1] ss:$4 sm:$0xff] %v183
      %v600 = vld.sshfl [vmem:[#allocation1] sm:$0xff pattern:$0x73625140]
      %v602 = vld.sshfl [vmem:[#allocation1 + $0x8] sm:$0xff pattern:$0x73625140]
      %v604 = vld.sshfl [vmem:[#allocation1 + $0x10] sm:$0xff pattern:$0x73625140]
      %606 = vrot.lane.b32.xlu0 %v600, 92
      %v607 = vpop.permute.xlu0 %606
      %608 = vrot.lane.b32.xlu0 %v602, 92
      %v609 = vpop.permute.xlu0 %608
      %610 = vrot.lane.b32.xlu0 %v604, 92
      %v611 = vpop.permute.xlu0 %610
      %vm612 = vcmask 752640
      %v613 = vsel %vm612, %v607, %v609
      %v614 = vsel %vm612, %v609, %v611
      %v616 = vsel %vm204, %v598, 0
      %v619 = vsel %vm208, %v613, 0
      %v622 = vsel %vm208, %v614, 0
      %v625 = vsel %vm208, %v611, 0
      %627 = vmatpush.bf16.msra.mxu0 0
      %628 = vmatpush.bf16.msra.mxu0 0
      %629 = vmatpush.bf16.msra.mxu0 0
      %630 = vmatpush.bf16.msra.mxu0 0
      %631 = vmatpush.bf16.msra.mxu0 0
      %632 = vmatpush.bf16.msra.mxu0 0
      %633 = vmatpush.bf16.msra.mxu0 0
      %634 = vmatpush.bf16.msra.mxu0 %v619
      %635 = vmatmul.bf16.gmra.mxu0 %v616
      %v636 = vpop.f32.mrf.mxu0
      %v637 = vadd.f32 0.0, %v636
      %v638 = vpop.f32.mrf.mxu0
      %639 = vdwg.mxu0
      %640 = vmatpush.bf16.msra.mxu0 0
      %641 = vmatpush.bf16.msra.mxu0 0
      %642 = vmatpush.bf16.msra.mxu0 0
      %643 = vmatpush.bf16.msra.mxu0 0
      %644 = vmatpush.bf16.msra.mxu0 0
      %645 = vmatpush.bf16.msra.mxu0 0
      %646 = vmatpush.bf16.msra.mxu0 0
      %647 = vmatpush.bf16.msra.mxu0 %v622
      %648 = vmatmul.bf16.gmra.mxu0 %v616
      %v649 = vpop.f32.mrf.mxu0
      %v650 = vadd.f32 0.0, %v649
      %v651 = vpop.f32.mrf.mxu0
      %652 = vdwg.mxu0
      %653 = vmatpush.bf16.msra.mxu0 0
      %654 = vmatpush.bf16.msra.mxu0 0
      %655 = vmatpush.bf16.msra.mxu0 0
      %656 = vmatpush.bf16.msra.mxu0 0
      %657 = vmatpush.bf16.msra.mxu0 0
      %658 = vmatpush.bf16.msra.mxu0 0
      %659 = vmatpush.bf16.msra.mxu0 0
      %660 = vmatpush.bf16.msra.mxu0 %v625
      %661 = vmatmul.bf16.gmra.mxu0 %v616
      %v662 = vpop.f32.mrf.mxu0
      %v663 = vadd.f32 0.0, %v662
      %v664 = vpop.f32.mrf.mxu0
      %665 = vdwg.mxu0
      %v666 = vadd.f32 %v594, %v637
      %v667 = vadd.f32 %v595, %v650
      %v668 = vadd.f32 %v596, %v663
      %s669 = scalar_lea.vmem %s0, 28
      %v670 = vld [vmem:[%s669] sm:$0xf]
      %671 = vst [vmem:[#allocation1] ss:$4 sm:$0xff] %v183
      %v672 = vld.sshfl [vmem:[#allocation1] sm:$0xff pattern:$0x73625140]
      %v674 = vld.sshfl [vmem:[#allocation1 + $0x8] sm:$0xff pattern:$0x73625140]
      %v676 = vld.sshfl [vmem:[#allocation1 + $0x10] sm:$0xff pattern:$0x73625140]
      %678 = vrot.lane.b32.xlu0 %v672, 91
      %v679 = vpop.permute.xlu0 %678
      %680 = vrot.lane.b32.xlu0 %v674, 91
      %v681 = vpop.permute.xlu0 %680
      %682 = vrot.lane.b32.xlu0 %v676, 91
      %v683 = vpop.permute.xlu0 %682
      %vm684 = vcmask 744448
      %v685 = vsel %vm684, %v679, %v681
      %v686 = vsel %vm684, %v681, %v683
      %v688 = vsel %vm204, %v670, 0
      %v691 = vsel %vm208, %v685, 0
      %v694 = vsel %vm208, %v686, 0
      %v697 = vsel %vm208, %v683, 0
      %699 = vmatpush.bf16.msra.mxu0 0
      %700 = vmatpush.bf16.msra.mxu0 0
      %701 = vmatpush.bf16.msra.mxu0 0
      %702 = vmatpush.bf16.msra.mxu0 0
      %703 = vmatpush.bf16.msra.mxu0 0
      %704 = vmatpush.bf16.msra.mxu0 0
      %705 = vmatpush.bf16.msra.mxu0 0
      %706 = vmatpush.bf16.msra.mxu0 %v691
      %707 = vmatmul.bf16.gmra.mxu0 %v688
      %v708 = vpop.f32.mrf.mxu0
      %v709 = vadd.f32 0.0, %v708
      %v710 = vpop.f32.mrf.mxu0
      %711 = vdwg.mxu0
      %712 = vmatpush.bf16.msra.mxu0 0
      %713 = vmatpush.bf16.msra.mxu0 0
      %714 = vmatpush.bf16.msra.mxu0 0
      %715 = vmatpush.bf16.msra.mxu0 0
      %716 = vmatpush.bf16.msra.mxu0 0
      %717 = vmatpush.bf16.msra.mxu0 0
      %718 = vmatpush.bf16.msra.mxu0 0
      %719 = vmatpush.bf16.msra.mxu0 %v694
      %720 = vmatmul.bf16.gmra.mxu0 %v688
      %v721 = vpop.f32.mrf.mxu0
      %v722 = vadd.f32 0.0, %v721
      %v723 = vpop.f32.mrf.mxu0
      %724 = vdwg.mxu0
      %725 = vmatpush.bf16.msra.mxu0 0
      %726 = vmatpush.bf16.msra.mxu0 0
      %727 = vmatpush.bf16.msra.mxu0 0
      %728 = vmatpush.bf16.msra.mxu0 0
      %729 = vmatpush.bf16.msra.mxu0 0
      %730 = vmatpush.bf16.msra.mxu0 0
      %731 = vmatpush.bf16.msra.mxu0 0
      %732 = vmatpush.bf16.msra.mxu0 %v697
      %733 = vmatmul.bf16.gmra.mxu0 %v688
      %v734 = vpop.f32.mrf.mxu0
      %v735 = vadd.f32 0.0, %v734
      %v736 = vpop.f32.mrf.mxu0
      %737 = vdwg.mxu0
      %v738 = vadd.f32 %v666, %v709
      %v739 = vadd.f32 %v667, %v722
      %v740 = vadd.f32 %v668, %v735
      %s741 = scalar_lea.vmem %s0, 32
      %v742 = vld [vmem:[%s741] sm:$0xf]
      %743 = vst [vmem:[#allocation1] ss:$4 sm:$0xff] %v183
      %v744 = vld.sshfl [vmem:[#allocation1] sm:$0xff pattern:$0x73625140]
      %v746 = vld.sshfl [vmem:[#allocation1 + $0x8] sm:$0xff pattern:$0x73625140]
      %v748 = vld.sshfl [vmem:[#allocation1 + $0x10] sm:$0xff pattern:$0x73625140]
      %750 = vrot.lane.b32.xlu0 %v744, 90
      %v751 = vpop.permute.xlu0 %750
      %752 = vrot.lane.b32.xlu0 %v746, 90
      %v753 = vpop.permute.xlu0 %752
      %754 = vrot.lane.b32.xlu0 %v748, 90
      %v755 = vpop.permute.xlu0 %754
      %vm756 = vcmask 736256
      %v757 = vsel %vm756, %v751, %v753
      %v758 = vsel %vm756, %v753, %v755
      %v760 = vsel %vm204, %v742, 0
      %v763 = vsel %vm208, %v757, 0
      %v766 = vsel %vm208, %v758, 0
      %v769 = vsel %vm208, %v755, 0
      %771 = vmatpush.bf16.msra.mxu0 0
      %772 = vmatpush.bf16.msra.mxu0 0
      %773 = vmatpush.bf16.msra.mxu0 0
      %774 = vmatpush.bf16.msra.mxu0 0
      %775 = vmatpush.bf16.msra.mxu0 0
      %776 = vmatpush.bf16.msra.mxu0 0
      %777 = vmatpush.bf16.msra.mxu0 0
      %778 = vmatpush.bf16.msra.mxu0 %v763
      %779 = vmatmul.bf16.gmra.mxu0 %v760
      %v780 = vpop.f32.mrf.mxu0
      %v781 = vadd.f32 0.0, %v780
      %v782 = vpop.f32.mrf.mxu0
      %783 = vdwg.mxu0
      %784 = vmatpush.bf16.msra.mxu0 0
      %785 = vmatpush.bf16.msra.mxu0 0
      %786 = vmatpush.bf16.msra.mxu0 0
      %787 = vmatpush.bf16.msra.mxu0 0
      %788 = vmatpush.bf16.msra.mxu0 0
      %789 = vmatpush.bf16.msra.mxu0 0
      %790 = vmatpush.bf16.msra.mxu0 0
      %791 = vmatpush.bf16.msra.mxu0 %v766
      %792 = vmatmul.bf16.gmra.mxu0 %v760
      %v793 = vpop.f32.mrf.mxu0
      %v794 = vadd.f32 0.0, %v793
      %v795 = vpop.f32.mrf.mxu0
      %796 = vdwg.mxu0
      %797 = vmatpush.bf16.msra.mxu0 0
      %798 = vmatpush.bf16.msra.mxu0 0
      %799 = vmatpush.bf16.msra.mxu0 0
      %800 = vmatpush.bf16.msra.mxu0 0
      %801 = vmatpush.bf16.msra.mxu0 0
      %802 = vmatpush.bf16.msra.mxu0 0
      %803 = vmatpush.bf16.msra.mxu0 0
      %804 = vmatpush.bf16.msra.mxu0 %v769
      %805 = vmatmul.bf16.gmra.mxu0 %v760
      %v806 = vpop.f32.mrf.mxu0
      %v807 = vadd.f32 0.0, %v806
      %v808 = vpop.f32.mrf.mxu0
      %809 = vdwg.mxu0
      %v810 = vadd.f32 %v738, %v781
      %v811 = vadd.f32 %v739, %v794
      %v812 = vadd.f32 %v740, %v807
      %814 = vrot.lane.b32.xlu0 %v810, 126
      %v815 = vpop.permute.xlu0 %814
      %817 = vrot.lane.b32.xlu0 %v810, 124
      %v818 = vpop.permute.xlu0 %817
      %820 = vrot.lane.b32.xlu0 %v810, 122
      %v821 = vpop.permute.xlu0 %820
      %823 = vrot.lane.b32.xlu0 %v810, 120
      %v824 = vpop.permute.xlu0 %823
      %826 = vrot.lane.b32.xlu0 %v810, 118
      %v827 = vpop.permute.xlu0 %826
      %829 = vrot.lane.b32.xlu0 %v810, 116
      %v830 = vpop.permute.xlu0 %829
      %833 = vrot.lane.b32.xlu0 %v810, 114
      %v834 = vpop.permute.xlu0 %833
      %835 = vrot.lane.b32.xlu0 %v811, 114
      %v836 = vpop.permute.xlu0 %835
      %vm837 = vcmask 932864
      %v838 = vsel %vm837, %v834, %v836
      %840 = vrot.lane.b32.xlu0 %v811, 112
      %v841 = vpop.permute.xlu0 %840
      %843 = vrot.lane.b32.xlu0 %v811, 110
      %v844 = vpop.permute.xlu0 %843
      %846 = vrot.lane.b32.xlu0 %v811, 108
      %v847 = vpop.permute.xlu0 %846
      %849 = vrot.lane.b32.xlu0 %v811, 106
      %v850 = vpop.permute.xlu0 %849
      %852 = vrot.lane.b32.xlu0 %v811, 104
      %v853 = vpop.permute.xlu0 %852
      %855 = vrot.lane.b32.xlu0 %v811, 102
      %v856 = vpop.permute.xlu0 %855
      %859 = vrot.lane.b32.xlu0 %v811, 100
      %v860 = vpop.permute.xlu0 %859
      %861 = vrot.lane.b32.xlu0 %v812, 100
      %v862 = vpop.permute.xlu0 %861
      %vm863 = vcmask 818176
      %v864 = vsel %vm863, %v860, %v862
      %866 = vrot.lane.b32.xlu0 %v812, 98
      %v867 = vpop.permute.xlu0 %866
      %vm869 = vcmask 130048
      %v870 = vsel %vm869, %v810, %v815
      %vm871 = vcmask 261120
      %v872 = vsel %vm871, %v870, %v818
      %vm873 = vcmask 392192
      %v874 = vsel %vm873, %v872, %v821
      %vm875 = vcmask 523264
      %v876 = vsel %vm875, %v874, %v824
      %vm877 = vcmask 654336
      %v878 = vsel %vm877, %v876, %v827
      %vm879 = vcmask 785408
      %v880 = vsel %vm879, %v878, %v830
      %vm881 = vcmask 916480
      %v882 = vsel %vm881, %v880, %v838
      %v883 = vsel %vm869, %v841, %v844
      %v884 = vsel %vm871, %v883, %v847
      %v885 = vsel %vm873, %v884, %v850
      %v886 = vsel %vm875, %v885, %v853
      %v887 = vsel %vm877, %v886, %v856
      %v888 = vsel %vm879, %v887, %v864
      %v889 = vsel %vm881, %v888, %v867
      %v890 = vpack.c.bf16 %v889, %v882
      %891 = vst [vmem:[%s177] sm:$0xff] %v890
      %v892 = vadd.f32 %v882, %v889
      %893 = vadd.xlane.f32.xlu0 %v892
      %v894 = vpop.xlane.xlu0 %893
      %v895 = vmul.f32 %v882, %v882
      %v896 = vmul.f32 %v889, %v889
      %v897 = vadd.f32 %v895, %v896
      %898 = vadd.xlane.f32.xlu0 %v897
      %v899 = vpop.xlane.xlu0 %898
      %vm900 = vcmask 7168
      %v901 = vsel %vm900, %v894, %v899
      %vm902 = vcmask 15360
      %v903 = vsel %vm902, %v901, 0.0
      %904 = vst [vmem:[%s181] sm:$0xff] %v903
      %p905 = scmp.lt.s32.totalorder %s15, 1
      %s906 = scalar_select %p905, %s15, 1
      %s907 = smul.addr %s906, 2
      %s908 = smul.addr %s907, 4
      %s909 = scalar_lea.vmem %s2, %s908
      %p910 = scmp.lt.s32.totalorder %s15, 1
      %s911 = scalar_select %p910, %s15, 1
      %s912 = smul.addr %s911, 8
      %s913 = scalar_lea.vmem %s3, %s912
      // Predicated region
      $region29: #{conv_block.2} parent=27 // pred_check
        %p914 = pneg %p80
      $region30: #{conv_block.2} parent=27 // pred_check_branch
        %916 = sbr.rel (%p914) target = $region32
      $region31: #{conv_block.2} parent=27 // pred_region
        _
      $region32: #{conv_block.2} parent=27 // pred_fallthru
        _
      // Predicated region
      $region33: #{conv_block.2} parent=27 // pred_check
        %p917 = pneg %p106
      $region34: #{conv_block.2} parent=27 // pred_check_branch
        %919 = sbr.rel (%p917) target = $region36
      $region35: #{conv_block.2} parent=27 // pred_region
        _
      $region36: #{conv_block.2} parent=27 // pred_fallthru
        _
    $region28: #{conv_block.2} parent=5 // pred_fallthru
      _
    %p920 = scmp.le.s32.totalorder 2, %s10
    // Predicated region
    $region37: #{conv_block.2} parent=5 // pred_check
      %p921 = pneg %p920
    $region38: #{conv_block.2} parent=5 // pred_check_branch
      %923 = sbr.rel (%p921) target = $region40
    $region39: #{conv_block.2} parent=5 // pred_region
      %s924 = ssub.s32 %s10, 2
      // Predicated region
      $region41: #{conv_block.2} parent=39 // pred_check
        %p925 = pneg %p86
      $region42: #{conv_block.2} parent=39 // pred_check_branch
        %927 = sbr.rel (%p925) target = $region44
      $region43: #{conv_block.2} parent=39 // pred_region
        %p928 = scmp.lt.s32.totalorder %s16, 1
        %s929 = scalar_select %p928, %s16, 1
        %s930 = smul.addr %s929, 2
        %s931 = smul.addr %s930, 4
        %s932 = scalar_lea.vmem %s2, %s931
      $region44: #{conv_block.2} parent=39 // pred_fallthru
        _
      // Predicated region
      $region45: #{conv_block.2} parent=39 // pred_check
        %p933 = pneg %p112
      $region46: #{conv_block.2} parent=39 // pred_check_branch
        %935 = sbr.rel (%p933) target = $region48
      $region47: #{conv_block.2} parent=39 // pred_region
        %p936 = scmp.lt.s32.totalorder %s16, 1
        %s937 = scalar_select %p936, %s16, 1
        %s938 = smul.addr %s937, 8
        %s939 = scalar_lea.vmem %s3, %s938
      $region48: #{conv_block.2} parent=39 // pred_fallthru
        _
    $region40: #{conv_block.2} parent=5 // pred_fallthru
      _
  $region6: #{conv_block.2} parent=0 // loop_footer
    %s14 = sadd.s32 1, %s10
  $region7: #{conv_block.2} parent=0 // loop_footer_branch
    %9 = sbr.rel target = $region3
  $region8: #{conv_block.2} parent=0 // loop_exit
    _

</llo_original>
